<compile_context>
chip_gen: v7x
topology: tpu7x:2x2x1
jax: 0.10.0
libtpu: 0.0.40
codegen_flags: <defaults>
</compile_context>

<pallas_src>
import jax
import jax.numpy as jnp
from jax.experimental import pallas as pl
from jax.experimental.pallas import tpu as pltpu


def _round_up(n: int, m: int) -> int:
    return ((n + m - 1) // m) * m


def snake_kernel(x_ref, alpha_ref, inv_ref, o_ref):
    # x_ref / o_ref: (TILE_R, TILE_T); alpha_ref / inv_ref: (TILE_R, 1).
    # Exact torch formula: x + inv * sin(alpha*x)^2
    # (same 1 EUP + 4 VALU cost as the 1-cos rewrite, but bit-compatible).
    x = x_ref[...]
    s = jnp.sin(alpha_ref[...] * x)
    o_ref[...] = (x + inv_ref[...] * (s * s)).astype(o_ref.dtype)


def snake1d(x, alpha, *, tile_t=None, tile_r=None,
            target_bytes=8 * 1024 * 1024):
    """Snake1d forward: x + (alpha + 1e-9)^-1 * sin(alpha * x)^2.

    x: (B, C, T), alpha: (1, C, 1). Any B, C, T (ragged tiles are masked,
    never padded in HBM).
    """
    B, C, T = x.shape
    assert alpha.shape == (1, C, 1), alpha.shape
    R = B * C
    itemsize = jnp.dtype(x.dtype).itemsize

    # --- hoisted per-channel constants (computed once, tiny) ---------------
    # Epsilon is added in f32 (bf16 would underflow 1e-9); then cast to the
    # compute dtype so the per-element chain runs in x.dtype (bf16 on
    # v6e/v7x halves VALU/EUP work; f32 inputs stay exactly f32).
    alpha_f32 = alpha.astype(jnp.float32)
    inv_f32 = 1.0 / (alpha_f32 + 1e-9)
    cdt = x.dtype
    alpha_rows = jnp.broadcast_to(
        alpha_f32.astype(cdt), (B, C, 1)).reshape(R, 1)
    inv_rows = jnp.broadcast_to(
        inv_f32.astype(cdt), (B, C, 1)).reshape(R, 1)

    # Free (bitcast) reshape under jit for contiguous row-major (B, C, T).
    x2 = x.reshape(R, T)

    # --- tile selection: lane-dense (mult of 128) time tiles, sublane-dense
    # (mult of 8) row tiles; time tile as large as possible first so each
    # per-row contiguous DMA run is long. -----------------------------------
    t_full = _round_up(T, 128)   # block may overhang T by <128 (masked)
    r_full = _round_up(R, 8)     # block may overhang R by <8   (masked)
    if tile_t is None:
        tile_t = (target_bytes // (8 * itemsize)) // 128 * 128
    tile_t = max(128, (int(tile_t) // 128) * 128)
    tile_t = min(tile_t, t_full)
    if tile_r is None:
        tile_r = (target_bytes // max(tile_t * itemsize, 1)) // 8 * 8
    tile_r = max(8, (int(tile_r) // 8) * 8)
    tile_r = min(tile_r, r_full)

    # Time axis leading: it always has the larger tile count, so megacore
    # sharding on v7x never leaves a TensorCore idle.
    grid = (pl.cdiv(T, tile_t), pl.cdiv(R, tile_r))

    tile_bytes = tile_r * tile_t * itemsize
    # in + out double-buffered + 2 MiB slack (constants, internal scratch);
    # capped well under v7x's 64 MiB/TC physical VMEM.
    vmem_limit = int(min(48 * 1024 * 1024,
                         max(16 * 1024 * 1024, 4 * tile_bytes + (2 << 20))))

    out2 = pl.pallas_call(
        snake_kernel,
        out_shape=jax.ShapeDtypeStruct((R, T), x.dtype),
        grid_spec=pltpu.PrefetchScalarGridSpec(
            num_scalar_prefetch=0,
            grid=grid,
            in_specs=[
                pl.BlockSpec((tile_r, tile_t), lambda t, r: (r, t)),
                pl.BlockSpec((tile_r, 1), lambda t, r: (r, 0)),
                pl.BlockSpec((tile_r, 1), lambda t, r: (r, 0)),
            ],
            out_specs=pl.BlockSpec((tile_r, tile_t), lambda t, r: (r, t)),
        ),
        compiler_params=pltpu.CompilerParams(
            dimension_semantics=("parallel", "parallel"),
            vmem_limit_bytes=vmem_limit,
        ),
    )(x2, alpha_rows, inv_rows)

    return out2.reshape(B, C, T)


def snake_ref(x, alpha):
    # Pure-JAX reference matching the PyTorch `snake` exactly.
    return x + (1.0 / (alpha + 1e-9)) * jnp.sin(alpha * x) ** 2


if __name__ == "__main__":
    key = jax.random.PRNGKey(0)
    k1, k2, k3 = jax.random.split(key, 3)

    snake1d_jit = jax.jit(
        snake1d, static_argnames=("tile_t", "tile_r", "target_bytes"))

    # Test 1: init-style alpha (ones); T not a multiple of 128 -> single
    # ragged time tile handled by block masking (no pad / slice anywhere).
    B, C, T = 2, 8, 200
    x = jax.random.normal(k1, (B, C, T), dtype=jnp.float32)
    alpha = jnp.ones((1, C, 1), dtype=jnp.float32)  # matches nn.Parameter(ones)
    out = snake1d_jit(x, alpha)
    jax.block_until_ready(out)
    ref = snake_ref(x, alpha)
    assert out.shape == x.shape and out.dtype == x.dtype
    assert jnp.allclose(out, ref, atol=1e-5, rtol=1e-5), float(
        jnp.max(jnp.abs(out - ref)))

    # Test 2: non-trivial alpha, explicit tiling -> 3 x 2 grid with a ragged
    # row tile (R = 48 rows, tile_r = 32).
    B, C, T = 3, 16, 384
    x = jax.random.normal(k2, (B, C, T), dtype=jnp.float32)
    alpha = 0.5 + jax.random.uniform(k3, (1, C, 1), dtype=jnp.float32)
    out = snake1d_jit(x, alpha, tile_t=128, tile_r=32)
    jax.block_until_ready(out)
    ref = snake_ref(x, alpha)
    assert out.shape == x.shape and out.dtype == x.dtype
    assert jnp.allclose(out, ref, atol=1e-5, rtol=1e-5), float(
        jnp.max(jnp.abs(out - ref)))

    print("KERNEL_OK")
</pallas_src>

<mosaic_0001>
module attributes {stable_mosaic.version = 11 : i64} {
  func.func @snake_kernel(%arg0: i32, %arg1: i32, %arg2: memref<16x256xf32, #tpu.memory_space<vmem>>, %arg3: memref<16x1xf32, #tpu.memory_space<vmem>>, %arg4: memref<16x1xf32, #tpu.memory_space<vmem>>, %arg5: memref<16x256xf32, #tpu.memory_space<vmem>>) attributes {dimension_semantics = [#tpu.dimension_semantics<parallel>, #tpu.dimension_semantics<parallel>], iteration_bounds = array<i64: 1, 1>, scalar_prefetch = 0 : i64, scratch_operands = 0 : i64, tpu.core_type = #tpu.core_type<tc>, window_params = [{transform_indices = @transform_0, window_bounds = array<i64: 16, 256>}, {transform_indices = @transform_1, window_bounds = array<i64: 16, 1>}, {transform_indices = @transform_2, window_bounds = array<i64: 16, 1>}, {transform_indices = @transform_3, window_bounds = array<i64: 16, 256>}]} {
    %c0 = arith.constant 0 : index
    %c0_0 = arith.constant 0 : index
    %0 = vector.load %arg2[%c0, %c0_0] : memref<16x256xf32, #tpu.memory_space<vmem>>, vector<16x256xf32>
    %c0_1 = arith.constant 0 : index
    %c0_2 = arith.constant 0 : index
    %1 = vector.load %arg3[%c0_1, %c0_2] : memref<16x1xf32, #tpu.memory_space<vmem>>, vector<16x1xf32>
    %2 = vector.broadcast %1 : vector<16x1xf32> to vector<16x256xf32>
    %3 = arith.mulf %2, %0 : vector<16x256xf32>
    %4 = math.sin %3 : vector<16x256xf32>
    %c0_3 = arith.constant 0 : index
    %c0_4 = arith.constant 0 : index
    %5 = vector.load %arg4[%c0_3, %c0_4] : memref<16x1xf32, #tpu.memory_space<vmem>>, vector<16x1xf32>
    %6 = arith.mulf %4, %4 : vector<16x256xf32>
    %7 = vector.broadcast %5 : vector<16x1xf32> to vector<16x256xf32>
    %8 = arith.mulf %7, %6 : vector<16x256xf32>
    %9 = arith.addf %0, %8 : vector<16x256xf32>
    %c0_5 = arith.constant 0 : index
    %c0_6 = arith.constant 0 : index
    %10 = vector.load %arg5[%c0_5, %c0_6] : memref<16x256xf32, #tpu.memory_space<vmem>>, vector<16x256xf32>
    tpu.vector_store %arg5[%c0_5, %c0_6], %9 {strides = array<i32>} : memref<16x256xf32, #tpu.memory_space<vmem>>, vector<16x256xf32>,
    return
  }
  func.func @transform_0(%arg0: i32, %arg1: i32) -> (i32, i32) {
    %c0_i32 = arith.constant 0 : i32
    return %arg1, %arg0 : i32, i32
  }
  func.func @transform_1(%arg0: i32, %arg1: i32) -> (i32, i32) {
    %c0_i32 = arith.constant 0 : i32
    %c0_i32_0 = arith.constant 0 : i32
    return %arg1, %c0_i32 : i32, i32
  }
  func.func @transform_2(%arg0: i32, %arg1: i32) -> (i32, i32) {
    %c0_i32 = arith.constant 0 : i32
    %c0_i32_0 = arith.constant 0 : i32
    return %arg1, %c0_i32 : i32, i32
  }
  func.func @transform_3(%arg0: i32, %arg1: i32) -> (i32, i32) {
    %c0_i32 = arith.constant 0 : i32
    return %arg1, %arg0 : i32, i32
  }
}

</mosaic_0001>

<llo_original>
// kernel: snake1d.1
$region0: #{snake1d.1}
  #allocation0 [shape = 'u32[]', space=smem, size = 0x4, offset = 0x4, fixed_abs, tag = 'smem constant byte address 0x4 - core index']
  #allocation1 [shape = 'u32[144,128]{1,0:T(1,128)}', space=vmem, size = 0x12000, scoped, tag = 'internal scratch']
  %s0 = inlined_call_operand.vmem [shape: f32[16,200], index: 0, kind: input, shape index: {}]
  %s1 = inlined_call_operand.vmem [shape: f32[16,1], index: 1, kind: input, shape index: {}]
  %s2 = inlined_call_operand.vmem [shape: f32[16,1], index: 2, kind: input, shape index: {}]
  %s3 = inlined_call_operand.hbm [shape: f32[16,200], index: 3, kind: output, shape index: {}]
  %s4 = sld [smem:[#allocation0]]
  $region22: #{snake1d.1} parent=0
    _
  %s6 = ssub.s32 1, %s4
  %s7 = scalar_select 0, %s6, %s4
  $region1: #{snake1d.1} parent=0
    #allocation2 [shape = 'u8[16384]{0}', space=vmem, size = 0x4000, scoped, tag = 'output window, operand 0, single buffered']
    #allocation3 [shape = 's32[1]{0}', space=sflag, size = 0x4, scoped, tag = 'scoped memory for snake1d.1']
    %8 = vsyncpa [#allocation3], 0
    // Predicated region
    $region2: #{snake1d.1} parent=1 // pred_check
      _
    $region3: #{snake1d.1} parent=1 // pred_check_branch
      %10 = sbr.rel (0) target = $region5
    $region4: #{snake1d.1} parent=1 // pred_region
      _
    $region5: #{snake1d.1} parent=1 // pred_fallthru
      _
    // Predicated region
    $region6: #{snake1d.1} parent=1 // pred_check
      _
    $region7: #{snake1d.1} parent=1 // pred_check_branch
      %12 = sbr.rel (0) target = $region9
    $region8: #{snake1d.1} parent=1 // pred_region
      _
    $region9: #{snake1d.1} parent=1 // pred_fallthru
      _
    // Predicated region
    $region10: #{snake1d.1} parent=1 // pred_check
      _
    $region11: #{snake1d.1} parent=1 // pred_check_branch
      %14 = sbr.rel (0) target = $region13
    $region12: #{snake1d.1} parent=1 // pred_region
      _
    $region13: #{snake1d.1} parent=1 // pred_fallthru
      _
    %v15 = vld [vmem:[%s0] sm:$0xff]
    %v16 = vld [vmem:[%s0 + $0x8] sm:$0xff]
    %v17 = vld [vmem:[%s0 + $0x10] sm:$0xff]
    %v18 = vld [vmem:[%s0 + $0x18] sm:$0xff]
    %v19 = vld [vmem:[%s1] sm:$0xff]
    %v20 = vld [vmem:[%s1 + $0x8] sm:$0xff]
    %22 = vset.pattern.permute.xlu0 0
    %23 = vperm.xlu0 %22, %v19
    %v24 = vpop.permute.xlu0 %23
    %27 = vset.pattern.permute.xlu0 0
    %28 = vperm.xlu0 %27, %v20
    %v29 = vpop.permute.xlu0 %28
    %v31 = vmul.f32 %v24, %v15
    %v32 = vmul.f32 %v24, %v16
    %v33 = vmul.f32 %v29, %v17
    %v34 = vmul.f32 %v29, %v18
    %v35 = vand.u32 2147483647, %v31
    %vm36 = vcmp.le.f32.partialorder %v35, 0.7853982
    %vm37 = vcmp.lt.s32.totalorder %v31, 0
    %v38 = vand.u32 %v31, 2139095040
    %v39 = vshrl.u32 %v38, 23
    %v40 = vsub.s32 %v39, 127
    %v41 = vand.u32 2147483647, %v31
    %v42 = vand.u32 %v41, 8388607
    %v43 = vor.u32 %v42, 8388608
    %v44 = vsub.s32 0, %v43
    %v45 = vadd.s32 %v40, 1
    %vm46 = vcmp.gt.s32.totalorder %v45, 0
    %v47 = vsel %vm46, %v45, 0
    %v48 = vshrl.u32 %v47, 5
    %v49 = vand.u32 %v47, 31
    %v50 = vsub.s32 32, %v49
    %v51 = vshrl.u32 683565275, %v50
    %v52 = vshll.u32 683565275, %v49
    %v53 = vshrl.u32 2475754826, %v50
    %v54 = vor.u32 %v52, %v53
    %v55 = vshll.u32 2475754826, %v49
    %v56 = vshrl.u32 2131351028, %v50
    %v57 = vor.u32 %v55, %v56
    %v58 = vshll.u32 2131351028, %v49
    %v59 = vshrl.u32 2102212464, %v50
    %v60 = vor.u32 %v58, %v59
    %v61 = vshll.u32 2102212464, %v49
    %v62 = vshrl.u32 920167782, %v50
    %v63 = vor.u32 %v61, %v62
    %v64 = vshll.u32 920167782, %v49
    %v65 = vshrl.u32 1326507024, %v50
    %v66 = vor.u32 %v64, %v65
    %vm67 = vcmp.lt.s32.totalorder %v48, 1
    %vm68 = vcmp.lt.s32.totalorder %v48, 2
    %vm69 = vcmp.lt.s32.totalorder %v48, 3
    %vm70 = vcmp.lt.s32.totalorder %v48, 4
    %v71 = vsel %vm67, %v51, %v54
    %v72 = vsel %vm70, %v60, 2102212464
    %v73 = vsel %vm69, %v57, %v72
    %v74 = vsel %vm68, %v71, %v73
    %v75 = vsel %vm67, %v54, %v57
    %v76 = vsel %vm70, %v63, 920167782
    %v77 = vsel %vm69, %v60, %v76
    %v78 = vsel %vm68, %v75, %v77
    %v79 = vsel %vm67, %v57, %v60
    %v80 = vsel %vm70, %v66, 1326507024
    %v81 = vsel %vm69, %v63, %v80
    %v82 = vsel %vm68, %v79, %v81
    %v83 = vshll.u32 %v43, 8
    %v84 = vmul.u32.u64.compose %v83, %v82
    %v85 = vextract.low.u32 %v84
    %v86 = vextract.high.u32 %v84
    %v87 = vmul.u32.u64.compose %v83, %v78
    %v88 = vextract.low.u32 %v87
    %v89 = vextract.high.u32 %v87
    %v90 = vmul.u32 %v83, %v74
    %v91 = vadd.s32 %v86, %v88
    %vm92 = vc.u32 %v86, %v88
    %v93 = vadd.s32 %v89, 1
    %v94 = vsel %vm92, %v93, %v89
    %v95 = vadd.s32 %v90, %v94
    %v96 = vadd.s32 %v95, 536870912
    %v97 = vshrl.u32 %v96, 30
    %v98 = vshll.u32 %v97, 30
    %v99 = vsub.s32 %v95, %v98
    %vm100 = vcmp.lt.s32.totalorder %v99, 0
    %v101 = vsub.s32 0, %v99
    %v102 = vsel %vm100, %v101, %v99
    %v103 = vclz %v102
    %v104 = vsub.s32 %v103, 2
    %vm105 = vcmp.gt.s32.totalorder 0, %v104
    %v106 = vsel %vm105, 0, %v104
    %v107 = vsub.s32 32, %v106
    %v108 = vshll.u32 %v99, %v106
    %v109 = vshrl.u32 %v91, %v107
    %v110 = vor.u32 %v108, %v109
    %v111 = vsub.s32 4294967266, %v106
    %v112 = vadd.s32 %v111, 127
    %v113 = vshll.u32 %v112, 23
    %v114 = vor.u32 4788187, %v113
    %v115 = vand.u32 2147483647, %v114
    %v117 = vcvt.s32.f32 %v110
    %v118 = vmul.f32 %v117, %v115
    %v119 = vxor.u32 %v118, 2147483648
    %v120 = vsel %vm37, %v119, %v118
    %v121 = vsub.s32 4, %v97
    %v122 = vsel %vm37, %v121, %v97
    %v123 = vsel %vm36, %v31, %v120
    %v124 = vsel %vm36, 0, %v122
    %v125 = vcosq.f32.pop %v123
    %v126 = vsinq.f32.pop %v123
    %vm127 = vweird.f32 %v31
    %v128 = vadd.s32 %v124, 3
    %v129 = vand.u32 %v128, 3
    %vm130 = vcmp.lt.s32.totalorder %v129, 2
    %vm131 = vcmp.eq.s32.totalorder %v129, 0
    %v132 = vxor.u32 %v126, 2147483648
    %v133 = vsel %vm131, %v125, %v132
    %vm134 = vcmp.eq.s32.totalorder %v129, 2
    %v135 = vxor.u32 %v125, 2147483648
    %v136 = vsel %vm134, %v135, %v126
    %v137 = vsel %vm130, %v133, %v136
    %v138 = vsel %vm127, nan, %v137
    %v139 = vand.u32 2147483647, %v32
    %vm140 = vcmp.le.f32.partialorder %v139, 0.7853982
    %vm141 = vcmp.lt.s32.totalorder %v32, 0
    %v142 = vand.u32 %v32, 2139095040
    %v143 = vshrl.u32 %v142, 23
    %v144 = vsub.s32 %v143, 127
    %v145 = vand.u32 2147483647, %v32
    %v146 = vand.u32 %v145, 8388607
    %v147 = vor.u32 %v146, 8388608
    %v148 = vsub.s32 0, %v147
    %v149 = vadd.s32 %v144, 1
    %vm150 = vcmp.gt.s32.totalorder %v149, 0
    %v151 = vsel %vm150, %v149, 0
    %v152 = vshrl.u32 %v151, 5
    %v153 = vand.u32 %v151, 31
    %v154 = vsub.s32 32, %v153
    %v155 = vshrl.u32 683565275, %v154
    %v156 = vshll.u32 683565275, %v153
    %v157 = vshrl.u32 2475754826, %v154
    %v158 = vor.u32 %v156, %v157
    %v159 = vshll.u32 2475754826, %v153
    %v160 = vshrl.u32 2131351028, %v154
    %v161 = vor.u32 %v159, %v160
    %v162 = vshll.u32 2131351028, %v153
    %v163 = vshrl.u32 2102212464, %v154
    %v164 = vor.u32 %v162, %v163
    %v165 = vshll.u32 2102212464, %v153
    %v166 = vshrl.u32 920167782, %v154
    %v167 = vor.u32 %v165, %v166
    %v168 = vshll.u32 920167782, %v153
    %v169 = vshrl.u32 1326507024, %v154
    %v170 = vor.u32 %v168, %v169
    %vm171 = vcmp.lt.s32.totalorder %v152, 1
    %vm172 = vcmp.lt.s32.totalorder %v152, 2
    %vm173 = vcmp.lt.s32.totalorder %v152, 3
    %vm174 = vcmp.lt.s32.totalorder %v152, 4
    %v175 = vsel %vm171, %v155, %v158
    %v176 = vsel %vm174, %v164, 2102212464
    %v177 = vsel %vm173, %v161, %v176
    %v178 = vsel %vm172, %v175, %v177
    %v179 = vsel %vm171, %v158, %v161
    %v180 = vsel %vm174, %v167, 920167782
    %v181 = vsel %vm173, %v164, %v180
    %v182 = vsel %vm172, %v179, %v181
    %v183 = vsel %vm171, %v161, %v164
    %v184 = vsel %vm174, %v170, 1326507024
    %v185 = vsel %vm173, %v167, %v184
    %v186 = vsel %vm172, %v183, %v185
    %v187 = vshll.u32 %v147, 8
    %v188 = vmul.u32.u64.compose %v187, %v186
    %v189 = vextract.low.u32 %v188
    %v190 = vextract.high.u32 %v188
    %v191 = vmul.u32.u64.compose %v187, %v182
    %v192 = vextract.low.u32 %v191
    %v193 = vextract.high.u32 %v191
    %v194 = vmul.u32 %v187, %v178
    %v195 = vadd.s32 %v190, %v192
    %vm196 = vc.u32 %v190, %v192
    %v197 = vadd.s32 %v193, 1
    %v198 = vsel %vm196, %v197, %v193
    %v199 = vadd.s32 %v194, %v198
    %v200 = vadd.s32 %v199, 536870912
    %v201 = vshrl.u32 %v200, 30
    %v202 = vshll.u32 %v201, 30
    %v203 = vsub.s32 %v199, %v202
    %vm204 = vcmp.lt.s32.totalorder %v203, 0
    %v205 = vsub.s32 0, %v203
    %v206 = vsel %vm204, %v205, %v203
    %v207 = vclz %v206
    %v208 = vsub.s32 %v207, 2
    %vm209 = vcmp.gt.s32.totalorder 0, %v208
    %v210 = vsel %vm209, 0, %v208
    %v211 = vsub.s32 32, %v210
    %v212 = vshll.u32 %v203, %v210
    %v213 = vshrl.u32 %v195, %v211
    %v214 = vor.u32 %v212, %v213
    %v215 = vsub.s32 4294967266, %v210
    %v216 = vadd.s32 %v215, 127
    %v217 = vshll.u32 %v216, 23
    %v218 = vor.u32 4788187, %v217
    %v219 = vand.u32 2147483647, %v218
    %v221 = vcvt.s32.f32 %v214
    %v222 = vmul.f32 %v221, %v219
    %v223 = vxor.u32 %v222, 2147483648
    %v224 = vsel %vm141, %v223, %v222
    %v225 = vsub.s32 4, %v201
    %v226 = vsel %vm141, %v225, %v201
    %v227 = vsel %vm140, %v32, %v224
    %v228 = vsel %vm140, 0, %v226
    %v229 = vcosq.f32.pop %v227
    %v230 = vsinq.f32.pop %v227
    %vm231 = vweird.f32 %v32
    %v232 = vadd.s32 %v228, 3
    %v233 = vand.u32 %v232, 3
    %vm234 = vcmp.lt.s32.totalorder %v233, 2
    %vm235 = vcmp.eq.s32.totalorder %v233, 0
    %v236 = vxor.u32 %v230, 2147483648
    %v237 = vsel %vm235, %v229, %v236
    %vm238 = vcmp.eq.s32.totalorder %v233, 2
    %v239 = vxor.u32 %v229, 2147483648
    %v240 = vsel %vm238, %v239, %v230
    %v241 = vsel %vm234, %v237, %v240
    %v242 = vsel %vm231, nan, %v241
    %v243 = vand.u32 2147483647, %v33
    %vm244 = vcmp.le.f32.partialorder %v243, 0.7853982
    %vm245 = vcmp.lt.s32.totalorder %v33, 0
    %v246 = vand.u32 %v33, 2139095040
    %v247 = vshrl.u32 %v246, 23
    %v248 = vsub.s32 %v247, 127
    %v249 = vand.u32 2147483647, %v33
    %v250 = vand.u32 %v249, 8388607
    %v251 = vor.u32 %v250, 8388608
    %v252 = vsub.s32 0, %v251
    %v253 = vadd.s32 %v248, 1
    %vm254 = vcmp.gt.s32.totalorder %v253, 0
    %v255 = vsel %vm254, %v253, 0
    %v256 = vshrl.u32 %v255, 5
    %v257 = vand.u32 %v255, 31
    %v258 = vsub.s32 32, %v257
    %v259 = vshrl.u32 683565275, %v258
    %v260 = vshll.u32 683565275, %v257
    %v261 = vshrl.u32 2475754826, %v258
    %v262 = vor.u32 %v260, %v261
    %v263 = vshll.u32 2475754826, %v257
    %v264 = vshrl.u32 2131351028, %v258
    %v265 = vor.u32 %v263, %v264
    %v266 = vshll.u32 2131351028, %v257
    %v267 = vshrl.u32 2102212464, %v258
    %v268 = vor.u32 %v266, %v267
    %v269 = vshll.u32 2102212464, %v257
    %v270 = vshrl.u32 920167782, %v258
    %v271 = vor.u32 %v269, %v270
    %v272 = vshll.u32 920167782, %v257
    %v273 = vshrl.u32 1326507024, %v258
    %v274 = vor.u32 %v272, %v273
    %vm275 = vcmp.lt.s32.totalorder %v256, 1
    %vm276 = vcmp.lt.s32.totalorder %v256, 2
    %vm277 = vcmp.lt.s32.totalorder %v256, 3
    %vm278 = vcmp.lt.s32.totalorder %v256, 4
    %v279 = vsel %vm275, %v259, %v262
    %v280 = vsel %vm278, %v268, 2102212464
    %v281 = vsel %vm277, %v265, %v280
    %v282 = vsel %vm276, %v279, %v281
    %v283 = vsel %vm275, %v262, %v265
    %v284 = vsel %vm278, %v271, 920167782
    %v285 = vsel %vm277, %v268, %v284
    %v286 = vsel %vm276, %v283, %v285
    %v287 = vsel %vm275, %v265, %v268
    %v288 = vsel %vm278, %v274, 1326507024
    %v289 = vsel %vm277, %v271, %v288
    %v290 = vsel %vm276, %v287, %v289
    %v291 = vshll.u32 %v251, 8
    %v292 = vmul.u32.u64.compose %v291, %v290
    %v293 = vextract.low.u32 %v292
    %v294 = vextract.high.u32 %v292
    %v295 = vmul.u32.u64.compose %v291, %v286
    %v296 = vextract.low.u32 %v295
    %v297 = vextract.high.u32 %v295
    %v298 = vmul.u32 %v291, %v282
    %v299 = vadd.s32 %v294, %v296
    %vm300 = vc.u32 %v294, %v296
    %v301 = vadd.s32 %v297, 1
    %v302 = vsel %vm300, %v301, %v297
    %v303 = vadd.s32 %v298, %v302
    %v304 = vadd.s32 %v303, 536870912
    %v305 = vshrl.u32 %v304, 30
    %v306 = vshll.u32 %v305, 30
    %v307 = vsub.s32 %v303, %v306
    %vm308 = vcmp.lt.s32.totalorder %v307, 0
    %v309 = vsub.s32 0, %v307
    %v310 = vsel %vm308, %v309, %v307
    %v311 = vclz %v310
    %v312 = vsub.s32 %v311, 2
    %vm313 = vcmp.gt.s32.totalorder 0, %v312
    %v314 = vsel %vm313, 0, %v312
    %v315 = vsub.s32 32, %v314
    %v316 = vshll.u32 %v307, %v314
    %v317 = vshrl.u32 %v299, %v315
    %v318 = vor.u32 %v316, %v317
    %v319 = vsub.s32 4294967266, %v314
    %v320 = vadd.s32 %v319, 127
    %v321 = vshll.u32 %v320, 23
    %v322 = vor.u32 4788187, %v321
    %v323 = vand.u32 2147483647, %v322
    %v325 = vcvt.s32.f32 %v318
    %v326 = vmul.f32 %v325, %v323
    %v327 = vxor.u32 %v326, 2147483648
    %v328 = vsel %vm245, %v327, %v326
    %v329 = vsub.s32 4, %v305
    %v330 = vsel %vm245, %v329, %v305
    %v331 = vsel %vm244, %v33, %v328
    %v332 = vsel %vm244, 0, %v330
    %v333 = vcosq.f32.pop %v331
    %v334 = vsinq.f32.pop %v331
    %vm335 = vweird.f32 %v33
    %v336 = vadd.s32 %v332, 3
    %v337 = vand.u32 %v336, 3
    %vm338 = vcmp.lt.s32.totalorder %v337, 2
    %vm339 = vcmp.eq.s32.totalorder %v337, 0
    %v340 = vxor.u32 %v334, 2147483648
    %v341 = vsel %vm339, %v333, %v340
    %vm342 = vcmp.eq.s32.totalorder %v337, 2
    %v343 = vxor.u32 %v333, 2147483648
    %v344 = vsel %vm342, %v343, %v334
    %v345 = vsel %vm338, %v341, %v344
    %v346 = vsel %vm335, nan, %v345
    %v347 = vand.u32 2147483647, %v34
    %vm348 = vcmp.le.f32.partialorder %v347, 0.7853982
    %vm349 = vcmp.lt.s32.totalorder %v34, 0
    %v350 = vand.u32 %v34, 2139095040
    %v351 = vshrl.u32 %v350, 23
    %v352 = vsub.s32 %v351, 127
    %v353 = vand.u32 2147483647, %v34
    %v354 = vand.u32 %v353, 8388607
    %v355 = vor.u32 %v354, 8388608
    %v356 = vsub.s32 0, %v355
    %v357 = vadd.s32 %v352, 1
    %vm358 = vcmp.gt.s32.totalorder %v357, 0
    %v359 = vsel %vm358, %v357, 0
    %v360 = vshrl.u32 %v359, 5
    %v361 = vand.u32 %v359, 31
    %v362 = vsub.s32 32, %v361
    %v363 = vshrl.u32 683565275, %v362
    %v364 = vshll.u32 683565275, %v361
    %v365 = vshrl.u32 2475754826, %v362
    %v366 = vor.u32 %v364, %v365
    %v367 = vshll.u32 2475754826, %v361
    %v368 = vshrl.u32 2131351028, %v362
    %v369 = vor.u32 %v367, %v368
    %v370 = vshll.u32 2131351028, %v361
    %v371 = vshrl.u32 2102212464, %v362
    %v372 = vor.u32 %v370, %v371
    %v373 = vshll.u32 2102212464, %v361
    %v374 = vshrl.u32 920167782, %v362
    %v375 = vor.u32 %v373, %v374
    %v376 = vshll.u32 920167782, %v361
    %v377 = vshrl.u32 1326507024, %v362
    %v378 = vor.u32 %v376, %v377
    %vm379 = vcmp.lt.s32.totalorder %v360, 1
    %vm380 = vcmp.lt.s32.totalorder %v360, 2
    %vm381 = vcmp.lt.s32.totalorder %v360, 3
    %vm382 = vcmp.lt.s32.totalorder %v360, 4
    %v383 = vsel %vm379, %v363, %v366
    %v384 = vsel %vm382, %v372, 2102212464
    %v385 = vsel %vm381, %v369, %v384
    %v386 = vsel %vm380, %v383, %v385
    %v387 = vsel %vm379, %v366, %v369
    %v388 = vsel %vm382, %v375, 920167782
    %v389 = vsel %vm381, %v372, %v388
    %v390 = vsel %vm380, %v387, %v389
    %v391 = vsel %vm379, %v369, %v372
    %v392 = vsel %vm382, %v378, 1326507024
    %v393 = vsel %vm381, %v375, %v392
    %v394 = vsel %vm380, %v391, %v393
    %v395 = vshll.u32 %v355, 8
    %v396 = vmul.u32.u64.compose %v395, %v394
    %v397 = vextract.low.u32 %v396
    %v398 = vextract.high.u32 %v396
    %v399 = vmul.u32.u64.compose %v395, %v390
    %v400 = vextract.low.u32 %v399
    %v401 = vextract.high.u32 %v399
    %v402 = vmul.u32 %v395, %v386
    %v403 = vadd.s32 %v398, %v400
    %vm404 = vc.u32 %v398, %v400
    %v405 = vadd.s32 %v401, 1
    %v406 = vsel %vm404, %v405, %v401
    %v407 = vadd.s32 %v402, %v406
    %v408 = vadd.s32 %v407, 536870912
    %v409 = vshrl.u32 %v408, 30
    %v410 = vshll.u32 %v409, 30
    %v411 = vsub.s32 %v407, %v410
    %vm412 = vcmp.lt.s32.totalorder %v411, 0
    %v413 = vsub.s32 0, %v411
    %v414 = vsel %vm412, %v413, %v411
    %v415 = vclz %v414
    %v416 = vsub.s32 %v415, 2
    %vm417 = vcmp.gt.s32.totalorder 0, %v416
    %v418 = vsel %vm417, 0, %v416
    %v419 = vsub.s32 32, %v418
    %v420 = vshll.u32 %v411, %v418
    %v421 = vshrl.u32 %v403, %v419
    %v422 = vor.u32 %v420, %v421
    %v423 = vsub.s32 4294967266, %v418
    %v424 = vadd.s32 %v423, 127
    %v425 = vshll.u32 %v424, 23
    %v426 = vor.u32 4788187, %v425
    %v427 = vand.u32 2147483647, %v426
    %v429 = vcvt.s32.f32 %v422
    %v430 = vmul.f32 %v429, %v427
    %v431 = vxor.u32 %v430, 2147483648
    %v432 = vsel %vm349, %v431, %v430
    %v433 = vsub.s32 4, %v409
    %v434 = vsel %vm349, %v433, %v409
    %v435 = vsel %vm348, %v34, %v432
    %v436 = vsel %vm348, 0, %v434
    %v437 = vcosq.f32.pop %v435
    %v438 = vsinq.f32.pop %v435
    %vm439 = vweird.f32 %v34
    %v440 = vadd.s32 %v436, 3
    %v441 = vand.u32 %v440, 3
    %vm442 = vcmp.lt.s32.totalorder %v441, 2
    %vm443 = vcmp.eq.s32.totalorder %v441, 0
    %v444 = vxor.u32 %v438, 2147483648
    %v445 = vsel %vm443, %v437, %v444
    %vm446 = vcmp.eq.s32.totalorder %v441, 2
    %v447 = vxor.u32 %v437, 2147483648
    %v448 = vsel %vm446, %v447, %v438
    %v449 = vsel %vm442, %v445, %v448
    %v450 = vsel %vm439, nan, %v449
    %v451 = vld [vmem:[%s2] sm:$0xff]
    %v452 = vld [vmem:[%s2 + $0x8] sm:$0xff]
    %v453 = vmul.f32 %v138, %v138
    %v454 = vmul.f32 %v242, %v242
    %v455 = vmul.f32 %v346, %v346
    %v456 = vmul.f32 %v450, %v450
    %458 = vset.pattern.permute.xlu0 0
    %459 = vperm.xlu0 %458, %v451
    %v460 = vpop.permute.xlu0 %459
    %463 = vset.pattern.permute.xlu0 0
    %464 = vperm.xlu0 %463, %v452
    %v465 = vpop.permute.xlu0 %464
    %v467 = vmul.f32 %v460, %v453
    %v468 = vmul.f32 %v460, %v454
    %v469 = vmul.f32 %v465, %v455
    %v470 = vmul.f32 %v465, %v456
    %v471 = vadd.f32 %v15, %v467
    %v472 = vadd.f32 %v16, %v468
    %v473 = vadd.f32 %v17, %v469
    %v474 = vadd.f32 %v18, %v470
    %475 = vst [vmem:[#allocation2] sm:$0xff] %v471
    %476 = vst [vmem:[#allocation2 + $0x8] sm:$0xff] %v472
    %477 = vst [vmem:[#allocation2 + $0x10] sm:$0xff] %v473
    %478 = vst [vmem:[#allocation2 + $0x18] sm:$0xff] %v474
    // Predicated region
    $region14: #{snake1d.1} parent=1 // pred_check
      _
    $region15: #{snake1d.1} parent=1 // pred_check_branch
      %480 = sbr.rel (0) target = $region17
    $region16: #{snake1d.1} parent=1 // pred_region
      %s482 = ssub.s32 512, 512
      %483 = vsyncadd [#allocation3], %s482
      %s484 = sshll.u32 [#allocation2], 4
      %s485 = int_to_ptr.vmem [resolvable:$true] %s484
      %490 = dma.vmem_to_hbm [thread:$0]  %s485, 512, %s3, [#allocation3], 256, 256, 16
    $region17: #{snake1d.1} parent=1 // pred_fallthru
      _
    // Predicated region
    $region18: #{snake1d.1} parent=1 // pred_check
      _
    $region19: #{snake1d.1} parent=1 // pred_check_branch
      %492 = sbr.rel (0) target = $region21
    $region20: #{snake1d.1} parent=1 // pred_region
      %493 = dma.done [#allocation3], 512
    $region21: #{snake1d.1} parent=1 // pred_fallthru
      _
    %494 = vsyncpa [#allocation3], 1

</llo_original>
